<compile_context>
chip_gen: v6e
topology: v6e:2x2x1
jax: 0.10.0
libtpu: 0.0.40
codegen_flags: <defaults>
</compile_context>

<pallas_src>
import jax
import jax.numpy as jnp
from jax.experimental import pallas as pl
from jax.experimental.pallas import tpu as pltpu

LANE = 128
TR_ROWS = 512               # rows per tile (multiple of 8); VMEM-safe everywhere
WD_UPPER_LIM = 100.0
EPS_CONST = 1e-20

WEIGHT_DECAY_INIT = 0.0005  # module defaults
SIGMA_INIT = 0.001


def _hypernet_kernel(mu_ref, sigma_ref, p_ref, eps_ref,
                     sampled_ref, gmu_ref, gsig_ref, partial_ref):
    mu = mu_ref[...]
    sigma = sigma_ref[...]
    p = p_ref[...]
    eps = eps_ref[...]

    # sample_weight_decay (inverse_sigma=False, reduce=False branch)
    delta = jnp.sqrt(sigma) * eps          # sampled - mu
    sampled = mu + delta                   # torch.normal(mu, sqrt(sigma))

    # One reciprocal, reused for both REINFORCE grads.
    # gmu  = -(1/(sigma+eps)) * (mu - sampled)            = rinv * delta
    # gsig = -(1/(2 sigma)) + (1/(2 sigma^2)) * delta^2   = 0.5*rinv*(rinv*delta^2 - 1)
    rinv = 1.0 / (sigma + EPS_CONST)
    gmu_ref[...] = rinv * delta
    gsig_ref[...] = 0.5 * rinv * (rinv * (delta * delta) - 1.0)

    sampled_c = jnp.clip(sampled, 0.0, WD_UPPER_LIM)
    sampled_ref[...] = sampled_c

    # all_L2_loss: normalize_func = exp, reg_term = p**2.
    # Sublane-preserving partial sum (pure VPU adds across vregs); the single
    # final cross-lane reduce happens in the wrapper.
    contrib = jnp.exp(sampled_c) * (p * p)
    partial_ref[...] = contrib.reshape(-1, 8, LANE).sum(axis=0)


def _padded_rows(total_elems):
    """Row count for the (R, 128) slab: sublane-aligned, tile-friendly."""
    r = -(-total_elems // LANE)            # ceil(total / 128)
    r = ((r + 7) // 8) * 8                 # sublane-align
    if r > TR_ROWS:                        # large: pad to a multiple of the tile
        r = ((r + TR_ROWS - 1) // TR_ROWS) * TR_ROWS
    return r


def _pick_tile_rows(R):
    if R <= TR_ROWS:
        assert R % 8 == 0, "slab row count must be a multiple of 8"
        return R
    assert R % TR_ROWS == 0, "pad slab rows to a multiple of TR_ROWS (512)"
    return TR_ROWS


def _pack(xs, rows, fill=0.0):
    flat = jnp.concatenate([x.reshape(-1).astype(jnp.float32) for x in xs])
    out = jnp.full((rows * LANE,), fill, jnp.float32).at[: flat.shape[0]].set(flat)
    return out.reshape(rows, LANE)


def hypernet_prob_loss_packed(mu2d, sig2d, p2d, eps2d):
    """Fused sample_weight_decay + all_L2_loss on pre-packed (R, 128) f32 slabs.

    Production callers should keep mu/sigma/params resident in this slab layout
    across steps (and draw eps into the same layout) to avoid re-packing /
    unpacking full HBM passes per call.
    """
    R = mu2d.shape[0]
    TR = _pick_tile_rows(R)
    grid_steps = R // TR

    row_spec = pl.BlockSpec((TR, LANE), lambda i: (i, 0))
    partial_spec = pl.BlockSpec((8, LANE), lambda i: (i, 0))

    n_elems = R * LANE
    cost = pl.CostEstimate(
        flops=12 * n_elems,
        transcendentals=2 * n_elems,
        bytes_accessed=(7 * n_elems + grid_steps * 8 * LANE) * 4,
    )

    sampled2d, gmu2d, gsig2d, partials = pl.pallas_call(
        _hypernet_kernel,
        out_shape=(
            jax.ShapeDtypeStruct((R, LANE), jnp.float32),
            jax.ShapeDtypeStruct((R, LANE), jnp.float32),
            jax.ShapeDtypeStruct((R, LANE), jnp.float32),
            jax.ShapeDtypeStruct((grid_steps * 8, LANE), jnp.float32),
        ),
        grid=(grid_steps,),
        in_specs=[row_spec, row_spec, row_spec, row_spec],
        out_specs=[row_spec, row_spec, row_spec, partial_spec],
        compiler_params=pltpu.CompilerParams(
            # Independent blocks; on v7x, CORE_PARALLEL / pl.core_map would
            # additionally shard this memory-bound stream across both TCs.
            dimension_semantics=("parallel",),
        ),
        cost_estimate=cost,
    )(mu2d, sig2d, p2d, eps2d)

    loss = jnp.sum(partials)  # tiny final cross-lane reduce in the wrapper
    return loss, sampled2d, gmu2d, gsig2d


def hypernet_prob_loss(params, mu_list, sigma_list, key):
    """List-of-tensors convenience wrapper around the packed-slab kernel.

    Packs to the slab layout per call (demo convenience only); production code
    should keep the slabs resident and call hypernet_prob_loss_packed directly.
    """
    shapes = [p.shape for p in params]
    sizes = [int(p.size) for p in params]
    total = sum(sizes)

    R = _padded_rows(total)

    mu2d = _pack(mu_list, R, fill=0.0)
    sig2d = _pack(sigma_list, R, fill=SIGMA_INIT)   # positive padding: finite gsig
    p2d = _pack(params, R, fill=0.0)                # zero padding: 0 loss contribution
    eps2d = jax.random.normal(key, (R, LANE), jnp.float32)

    loss, sampled2d, gmu2d, gsig2d = hypernet_prob_loss_packed(mu2d, sig2d, p2d, eps2d)

    def unpack(slab):
        flat = slab.reshape(-1)[:total]
        outs, off = [], 0
        for shp, sz in zip(shapes, sizes):
            outs.append(flat[off:off + sz].reshape(shp))
            off += sz
        return outs

    return loss, unpack(sampled2d), unpack(gmu2d), unpack(gsig2d)


if __name__ == "__main__":
    key = jax.random.PRNGKey(0)
    key_params, key_eps = jax.random.split(key)

    # Deterministic synthetic "model parameters" (what named_parameters() would
    # yield for a small conv/bn/classifier stack).  PyTorch conv weights are OIHW.
    param_shapes = {
        "conv.weight": (8, 4, 3, 3),
        "conv.bias": (8,),
        "bn.weight": (8,),
        "bn.bias": (8,),
        "classifier.weight": (16, 128),
        "classifier.bias": (16,),
    }
    keys = jax.random.split(key_params, len(param_shapes))
    params = [0.1 * jax.random.normal(k, shp, jnp.float32)
              for k, shp in zip(keys, param_shapes.values())]

    # init_wdecay('per_param'): mu = weight_decay_init, sigma = sigma_init (full_like)
    mu_list = [jnp.full(p.shape, WEIGHT_DECAY_INIT, jnp.float32) for p in params]
    sigma_list = [jnp.full(p.shape, SIGMA_INIT, jnp.float32) for p in params]

    loss, sampled_wds, grads_mu, grads_sigma = hypernet_prob_loss(
        params, mu_list, sigma_list, key_eps)
    jax.block_until_ready(loss)

    # --- correctness checks -------------------------------------------------
    # Recover the un-clamped sample from grads_mu and re-derive everything else.
    ref_loss = 0.0
    for p, mu, sig, s_c, g_mu, g_sig in zip(params, mu_list, sigma_list,
                                            sampled_wds, grads_mu, grads_sigma):
        assert s_c.shape == p.shape and g_mu.shape == p.shape and g_sig.shape == p.shape
        sampled_raw = mu + g_mu * (sig + EPS_CONST)          # invert the gmu formula
        assert jnp.allclose(jnp.clip(sampled_raw, 0.0, WD_UPPER_LIM), s_c,
                            rtol=1e-5, atol=1e-5)
        g_sig_ref = (-(1.0 / (2.0 * sig + EPS_CONST))
                     + (1.0 / (2.0 * sig * sig + EPS_CONST)) * (sampled_raw - mu) ** 2)
        assert jnp.allclose(g_sig, g_sig_ref, rtol=1e-4, atol=1e-2)
        ref_loss = ref_loss + jnp.sum(jnp.exp(s_c) * p * p)
    assert jnp.allclose(loss, ref_loss, rtol=1e-5, atol=1e-5), (loss, ref_loss)
    assert all(bool(jnp.all((s >= 0.0) & (s <= WD_UPPER_LIM))) for s in sampled_wds)

    print("KERNEL_OK")
</pallas_src>

<mosaic_0001>
module attributes {stable_mosaic.version = 11 : i64} {
  func.func @_hypernet_kernel(%arg0: i32, %arg1: memref<24x128xf32, #tpu.memory_space<vmem>>, %arg2: memref<24x128xf32, #tpu.memory_space<vmem>>, %arg3: memref<24x128xf32, #tpu.memory_space<vmem>>, %arg4: memref<24x128xf32, #tpu.memory_space<vmem>>, %arg5: memref<24x128xf32, #tpu.memory_space<vmem>>, %arg6: memref<24x128xf32, #tpu.memory_space<vmem>>, %arg7: memref<24x128xf32, #tpu.memory_space<vmem>>, %arg8: memref<8x128xf32, #tpu.memory_space<vmem>>) attributes {dimension_semantics = [#tpu.dimension_semantics<parallel>], iteration_bounds = array<i64: 1>, scalar_prefetch = 0 : i64, scratch_operands = 0 : i64, tpu.core_type = #tpu.core_type<tc>, window_params = [{transform_indices = @transform_0, window_bounds = array<i64: 24, 128>}, {transform_indices = @transform_1, window_bounds = array<i64: 24, 128>}, {transform_indices = @transform_2, window_bounds = array<i64: 24, 128>}, {transform_indices = @transform_3, window_bounds = array<i64: 24, 128>}, {transform_indices = @transform_4, window_bounds = array<i64: 24, 128>}, {transform_indices = @transform_5, window_bounds = array<i64: 24, 128>}, {transform_indices = @transform_6, window_bounds = array<i64: 24, 128>}, {transform_indices = @transform_7, window_bounds = array<i64: 8, 128>}]} {
    %c0 = arith.constant 0 : index
    %c0_0 = arith.constant 0 : index
    %0 = vector.load %arg1[%c0, %c0_0] : memref<24x128xf32, #tpu.memory_space<vmem>>, vector<24x128xf32>
    %c0_1 = arith.constant 0 : index
    %c0_2 = arith.constant 0 : index
    %1 = vector.load %arg2[%c0_1, %c0_2] : memref<24x128xf32, #tpu.memory_space<vmem>>, vector<24x128xf32>
    %c0_3 = arith.constant 0 : index
    %c0_4 = arith.constant 0 : index
    %2 = vector.load %arg3[%c0_3, %c0_4] : memref<24x128xf32, #tpu.memory_space<vmem>>, vector<24x128xf32>
    %c0_5 = arith.constant 0 : index
    %c0_6 = arith.constant 0 : index
    %3 = vector.load %arg4[%c0_5, %c0_6] : memref<24x128xf32, #tpu.memory_space<vmem>>, vector<24x128xf32>
    %4 = math.sqrt %1 : vector<24x128xf32>
    %5 = arith.mulf %4, %3 : vector<24x128xf32>
    %6 = arith.addf %0, %5 : vector<24x128xf32>
    %cst = arith.constant 9.99999968E-21 : f32
    %7 = vector.broadcast %cst : f32 to vector<24x128xf32>
    %8 = arith.addf %1, %7 : vector<24x128xf32>
    %cst_7 = arith.constant 1.000000e+00 : f32
    %9 = vector.broadcast %cst_7 : f32 to vector<24x128xf32>
    %10 = arith.divf %9, %8 : vector<24x128xf32>
    %11 = arith.mulf %10, %5 : vector<24x128xf32>
    %c0_8 = arith.constant 0 : index
    %c0_9 = arith.constant 0 : index
    %12 = vector.load %arg6[%c0_8, %c0_9] : memref<24x128xf32, #tpu.memory_space<vmem>>, vector<24x128xf32>
    tpu.vector_store %arg6[%c0_8, %c0_9], %11 {strides = array<i32>} : memref<24x128xf32, #tpu.memory_space<vmem>>, vector<24x128xf32>,
    %cst_10 = arith.constant 5.000000e-01 : f32
    %13 = vector.broadcast %cst_10 : f32 to vector<24x128xf32>
    %14 = arith.mulf %13, %10 : vector<24x128xf32>
    %15 = arith.mulf %5, %5 : vector<24x128xf32>
    %16 = arith.mulf %10, %15 : vector<24x128xf32>
    %cst_11 = arith.constant 1.000000e+00 : f32
    %17 = vector.broadcast %cst_11 : f32 to vector<24x128xf32>
    %18 = arith.subf %16, %17 : vector<24x128xf32>
    %19 = arith.mulf %14, %18 : vector<24x128xf32>
    %c0_12 = arith.constant 0 : index
    %c0_13 = arith.constant 0 : index
    %20 = vector.load %arg7[%c0_12, %c0_13] : memref<24x128xf32, #tpu.memory_space<vmem>>, vector<24x128xf32>
    tpu.vector_store %arg7[%c0_12, %c0_13], %19 {strides = array<i32>} : memref<24x128xf32, #tpu.memory_space<vmem>>, vector<24x128xf32>,
    %cst_14 = arith.constant 0.000000e+00 : f32
    %cst_15 = arith.constant 1.000000e+02 : f32
    %21 = vector.broadcast %cst_14 : f32 to vector<24x128xf32>
    %22 = arith.maximumf %21, %6 : vector<24x128xf32>
    %23 = vector.broadcast %cst_15 : f32 to vector<24x128xf32>
    %24 = arith.minimumf %23, %22 : vector<24x128xf32>
    %c0_16 = arith.constant 0 : index
    %c0_17 = arith.constant 0 : index
    %25 = vector.load %arg5[%c0_16, %c0_17] : memref<24x128xf32, #tpu.memory_space<vmem>>, vector<24x128xf32>
    tpu.vector_store %arg5[%c0_16, %c0_17], %24 {strides = array<i32>} : memref<24x128xf32, #tpu.memory_space<vmem>>, vector<24x128xf32>,
    %26 = math.exp %24 : vector<24x128xf32>
    %27 = arith.mulf %2, %2 : vector<24x128xf32>
    %28 = arith.mulf %26, %27 : vector<24x128xf32>
    %29 = vector.shape_cast %28 : vector<24x128xf32> to vector<3x8x128xf32>
    %cst_18 = arith.constant dense<0.000000e+00> : vector<8x128xf32>
    %30 = vector.multi_reduction <add>, %29, %cst_18 [0] : vector<3x8x128xf32> to vector<8x128xf32>
    %c0_19 = arith.constant 0 : index
    %c0_20 = arith.constant 0 : index
    %31 = vector.load %arg8[%c0_19, %c0_20] : memref<8x128xf32, #tpu.memory_space<vmem>>, vector<8x128xf32>
    tpu.vector_store %arg8[%c0_19, %c0_20], %30 {strides = array<i32>} : memref<8x128xf32, #tpu.memory_space<vmem>>, vector<8x128xf32>,
    return
  }
  func.func @transform_0(%arg0: i32) -> (i32, i32) {
    %c0_i32 = arith.constant 0 : i32
    %c0_i32_0 = arith.constant 0 : i32
    return %arg0, %c0_i32 : i32, i32
  }
  func.func @transform_1(%arg0: i32) -> (i32, i32) {
    %c0_i32 = arith.constant 0 : i32
    %c0_i32_0 = arith.constant 0 : i32
    return %arg0, %c0_i32 : i32, i32
  }
  func.func @transform_2(%arg0: i32) -> (i32, i32) {
    %c0_i32 = arith.constant 0 : i32
    %c0_i32_0 = arith.constant 0 : i32
    return %arg0, %c0_i32 : i32, i32
  }
  func.func @transform_3(%arg0: i32) -> (i32, i32) {
    %c0_i32 = arith.constant 0 : i32
    %c0_i32_0 = arith.constant 0 : i32
    return %arg0, %c0_i32 : i32, i32
  }
  func.func @transform_4(%arg0: i32) -> (i32, i32) {
    %c0_i32 = arith.constant 0 : i32
    %c0_i32_0 = arith.constant 0 : i32
    return %arg0, %c0_i32 : i32, i32
  }
  func.func @transform_5(%arg0: i32) -> (i32, i32) {
    %c0_i32 = arith.constant 0 : i32
    %c0_i32_0 = arith.constant 0 : i32
    return %arg0, %c0_i32 : i32, i32
  }
  func.func @transform_6(%arg0: i32) -> (i32, i32) {
    %c0_i32 = arith.constant 0 : i32
    %c0_i32_0 = arith.constant 0 : i32
    return %arg0, %c0_i32 : i32, i32
  }
  func.func @transform_7(%arg0: i32) -> (i32, i32) {
    %c0_i32 = arith.constant 0 : i32
    %c0_i32_0 = arith.constant 0 : i32
    return %arg0, %c0_i32 : i32, i32
  }
}

</mosaic_0001>

<llo_original>
// kernel: tpu_custom_call.1
$region0: #{tpu_custom_call.1}
  #allocation0 [shape = 'u32[]', space=smem, size = 0x4, offset = 0x4, fixed_abs, tag = 'smem constant byte address 0x4 - core index']
  #allocation1 [shape = 'u32[144,128]{1,0:T(1,128)}', space=vmem, size = 0x12000, scoped, tag = 'internal scratch']
  %s0 = inlined_call_operand.hbm [shape: f32[24,128], index: 0, kind: input, shape index: {}]
  %s1 = inlined_call_operand.hbm [shape: f32[24,128], index: 1, kind: input, shape index: {}]
  %s2 = inlined_call_operand.hbm [shape: f32[24,128], index: 2, kind: input, shape index: {}]
  %s3 = inlined_call_operand.hbm [shape: f32[24,128], index: 3, kind: input, shape index: {}]
  %s4 = inlined_call_operand.hbm [shape: f32[24,128], index: 4, kind: output, shape index: {0}]
  %s5 = inlined_call_operand.hbm [shape: f32[24,128], index: 5, kind: output, shape index: {1}]
  %s6 = inlined_call_operand.hbm [shape: f32[24,128], index: 6, kind: output, shape index: {2}]
  %s7 = inlined_call_operand.hbm [shape: f32[8,128], index: 7, kind: output, shape index: {3}]
  %8 = xla_tuple %s4, %s5, %s6, %s7
  %s9 = sld [smem:[#allocation0]]
  $region66: #{tpu_custom_call.1} parent=0
    _
  %s11 = ssub.s32 1, %s9
  %s12 = scalar_select 0, %s11, %s9
  $region1: #{tpu_custom_call.1} parent=0
    #allocation2 [shape = 'u8[12288]{0}', space=vmem, size = 0x3000, scoped, tag = 'input window, operand 0, single buffered']
    #allocation3 [shape = 's32[1]{0}', space=sflag, size = 0x4, scoped, tag = 'scoped memory for tpu_custom_call.1']
    #allocation4 [shape = 's32[1]{0}', space=sflag, size = 0x4, scoped, tag = 'scoped memory for tpu_custom_call.1']
    #allocation5 [shape = 'u8[12288]{0}', space=vmem, size = 0x3000, scoped, tag = 'input window, operand 1, single buffered']
    #allocation6 [shape = 's32[1]{0}', space=sflag, size = 0x4, scoped, tag = 'scoped memory for tpu_custom_call.1']
    #allocation7 [shape = 'u8[12288]{0}', space=vmem, size = 0x3000, scoped, tag = 'input window, operand 2, single buffered']
    #allocation8 [shape = 'u8[12288]{0}', space=vmem, size = 0x3000, scoped, tag = 'input window, operand 3, single buffered']
    #allocation9 [shape = 's32[1]{0}', space=sflag, size = 0x4, scoped, tag = 'scoped memory for tpu_custom_call.1']
    #allocation10 [shape = 'u8[12288]{0}', space=vmem, size = 0x3000, scoped, tag = 'output window, operand 0, single buffered']
    #allocation11 [shape = 'u8[12288]{0}', space=vmem, size = 0x3000, scoped, tag = 'output window, operand 1, single buffered']
    #allocation12 [shape = 's32[1]{0}', space=sflag, size = 0x4, scoped, tag = 'scoped memory for tpu_custom_call.1']
    #allocation13 [shape = 'u8[12288]{0}', space=vmem, size = 0x3000, scoped, tag = 'output window, operand 2, single buffered']
    #allocation14 [shape = 'u8[4096]{0}', space=vmem, size = 0x1000, scoped, tag = 'output window, operand 3, single buffered']
    #allocation15 [shape = 's32[1]{0}', space=sflag, size = 0x4, scoped, tag = 'scoped memory for tpu_custom_call.1']
    %13 = vsyncpa [#allocation3], 0
    %14 = vsyncpa [#allocation6], 0
    %15 = vsyncpa [#allocation9], 0
    %16 = vsyncpa [#allocation4], 0
    %17 = vsyncpa [#allocation12], 0
    %18 = vsyncpa [#allocation15], 0
    // Predicated region
    $region2: #{tpu_custom_call.1} parent=1 // pred_check
      _
    $region3: #{tpu_custom_call.1} parent=1 // pred_check_branch
      %20 = sbr.rel (0) target = $region5
    $region4: #{tpu_custom_call.1} parent=1 // pred_region
      %s22 = ssub.s32 384, 384
      %23 = vsyncadd [#allocation3], %s22
      %s24 = sshll.u32 [#allocation2], 4
      %s25 = int_to_ptr.vmem [resolvable:$true] %s24
      %30 = dma.hbm_to_vmem [thread:$0]  %s0, 384, %s25, [#allocation3], 128, 128, 8
    $region5: #{tpu_custom_call.1} parent=1 // pred_fallthru
      _
    // Predicated region
    $region6: #{tpu_custom_call.1} parent=1 // pred_check
      _
    $region7: #{tpu_custom_call.1} parent=1 // pred_check_branch
      %32 = sbr.rel (0) target = $region9
    $region8: #{tpu_custom_call.1} parent=1 // pred_region
      %s34 = ssub.s32 384, 384
      %35 = vsyncadd [#allocation6], %s34
      %s36 = sshll.u32 [#allocation5], 4
      %s37 = int_to_ptr.vmem [resolvable:$true] %s36
      %42 = dma.hbm_to_vmem [thread:$0]  %s1, 384, %s37, [#allocation6], 128, 128, 8
    $region9: #{tpu_custom_call.1} parent=1 // pred_fallthru
      _
    // Predicated region
    $region10: #{tpu_custom_call.1} parent=1 // pred_check
      _
    $region11: #{tpu_custom_call.1} parent=1 // pred_check_branch
      %44 = sbr.rel (0) target = $region13
    $region12: #{tpu_custom_call.1} parent=1 // pred_region
      %s46 = ssub.s32 384, 384
      %47 = vsyncadd [#allocation6], %s46
      %s48 = sshll.u32 [#allocation7], 4
      %s49 = int_to_ptr.vmem [resolvable:$true] %s48
      %54 = dma.hbm_to_vmem [thread:$0]  %s2, 384, %s49, [#allocation6], 128, 128, 8
    $region13: #{tpu_custom_call.1} parent=1 // pred_fallthru
      _
    // Predicated region
    $region14: #{tpu_custom_call.1} parent=1 // pred_check
      _
    $region15: #{tpu_custom_call.1} parent=1 // pred_check_branch
      %56 = sbr.rel (0) target = $region17
    $region16: #{tpu_custom_call.1} parent=1 // pred_region
      %s58 = ssub.s32 384, 384
      %59 = vsyncadd [#allocation9], %s58
      %s60 = sshll.u32 [#allocation8], 4
      %s61 = int_to_ptr.vmem [resolvable:$true] %s60
      %66 = dma.hbm_to_vmem [thread:$0]  %s3, 384, %s61, [#allocation9], 128, 128, 8
    $region17: #{tpu_custom_call.1} parent=1 // pred_fallthru
      _
    // Predicated region
    $region18: #{tpu_custom_call.1} parent=1 // pred_check
      _
    $region19: #{tpu_custom_call.1} parent=1 // pred_check_branch
      %68 = sbr.rel (0) target = $region21
    $region20: #{tpu_custom_call.1} parent=1 // pred_region
      %69 = dma.done [#allocation3], 384
    $region21: #{tpu_custom_call.1} parent=1 // pred_fallthru
      _
    // Predicated region
    $region22: #{tpu_custom_call.1} parent=1 // pred_check
      _
    $region23: #{tpu_custom_call.1} parent=1 // pred_check_branch
      %71 = sbr.rel (0) target = $region25
    $region24: #{tpu_custom_call.1} parent=1 // pred_region
      %72 = dma.done [#allocation6], 384
    $region25: #{tpu_custom_call.1} parent=1 // pred_fallthru
      _
    // Predicated region
    $region26: #{tpu_custom_call.1} parent=1 // pred_check
      _
    $region27: #{tpu_custom_call.1} parent=1 // pred_check_branch
      %74 = sbr.rel (0) target = $region29
    $region28: #{tpu_custom_call.1} parent=1 // pred_region
      %75 = dma.done [#allocation6], 384
    $region29: #{tpu_custom_call.1} parent=1 // pred_fallthru
      _
    // Predicated region
    $region30: #{tpu_custom_call.1} parent=1 // pred_check
      _
    $region31: #{tpu_custom_call.1} parent=1 // pred_check_branch
      %77 = sbr.rel (0) target = $region33
    $region32: #{tpu_custom_call.1} parent=1 // pred_region
      %78 = dma.done [#allocation9], 384
    $region33: #{tpu_custom_call.1} parent=1 // pred_fallthru
      _
    %v79 = vld [vmem:[#allocation2] sm:$0xff]
    %v80 = vld [vmem:[#allocation2 + $0x8] sm:$0xff]
    %v81 = vld [vmem:[#allocation2 + $0x10] sm:$0xff]
    %v82 = vld [vmem:[#allocation5] sm:$0xff]
    %v83 = vld [vmem:[#allocation5 + $0x8] sm:$0xff]
    %v84 = vld [vmem:[#allocation5 + $0x10] sm:$0xff]
    %v85 = vld [vmem:[#allocation7] sm:$0xff]
    %v86 = vld [vmem:[#allocation7 + $0x8] sm:$0xff]
    %v87 = vld [vmem:[#allocation7 + $0x10] sm:$0xff]
    %v88 = vld [vmem:[#allocation8] sm:$0xff]
    %v89 = vld [vmem:[#allocation8 + $0x8] sm:$0xff]
    %v90 = vld [vmem:[#allocation8 + $0x10] sm:$0xff]
    %v91 = vrsqrt.pop %v82
    %v92 = vmul.f32 %v82, %v91
    %vm93 = vcmp.eq.f32.partialorder %v82, inf
    %v94 = vsel %vm93, %v82, %v92
    %vm95 = vcmp.eq.f32.partialorder %v82, 0.0
    %v96 = vand.u32 %v82, 2147483648
    %v97 = vsel %vm95, %v96, %v94
    %v98 = vrsqrt.pop %v83
    %v99 = vmul.f32 %v83, %v98
    %vm100 = vcmp.eq.f32.partialorder %v83, inf
    %v101 = vsel %vm100, %v83, %v99
    %vm102 = vcmp.eq.f32.partialorder %v83, 0.0
    %v103 = vand.u32 %v83, 2147483648
    %v104 = vsel %vm102, %v103, %v101
    %v105 = vrsqrt.pop %v84
    %v106 = vmul.f32 %v84, %v105
    %vm107 = vcmp.eq.f32.partialorder %v84, inf
    %v108 = vsel %vm107, %v84, %v106
    %vm109 = vcmp.eq.f32.partialorder %v84, 0.0
    %v110 = vand.u32 %v84, 2147483648
    %v111 = vsel %vm109, %v110, %v108
    %v112 = vmul.f32 %v97, %v88
    %v113 = vmul.f32 %v104, %v89
    %v114 = vmul.f32 %v111, %v90
    %v115 = vadd.f32 %v79, %v112
    %v116 = vadd.f32 %v80, %v113
    %v117 = vadd.f32 %v81, %v114
    %v118 = vadd.f32 %v82, 1e-20
    %v119 = vadd.f32 %v83, 1e-20
    %v120 = vadd.f32 %v84, 1e-20
    %v121 = vrcp.pop %v118
    %v122 = vmul.f32 1.0, %v121
    %v123 = vrcp.pop %v119
    %v124 = vmul.f32 1.0, %v123
    %v125 = vrcp.pop %v120
    %v126 = vmul.f32 1.0, %v125
    %v127 = vmul.f32 %v122, %v112
    %v128 = vmul.f32 %v124, %v113
    %v129 = vmul.f32 %v126, %v114
    %130 = vst [vmem:[#allocation11] sm:$0xff] %v127
    %131 = vst [vmem:[#allocation11 + $0x8] sm:$0xff] %v128
    %132 = vst [vmem:[#allocation11 + $0x10] sm:$0xff] %v129
    %v133 = vmul.f32 %v122, 0.5
    %v134 = vmul.f32 %v124, 0.5
    %v135 = vmul.f32 %v126, 0.5
    %v136 = vmul.f32 %v112, %v112
    %v137 = vmul.f32 %v113, %v113
    %v138 = vmul.f32 %v114, %v114
    %v139 = vmul.f32 %v122, %v136
    %v140 = vmul.f32 %v124, %v137
    %v141 = vmul.f32 %v126, %v138
    %v142 = vsub.f32 %v139, 1.0
    %v143 = vsub.f32 %v140, 1.0
    %v144 = vsub.f32 %v141, 1.0
    %v145 = vmul.f32 %v133, %v142
    %v146 = vmul.f32 %v134, %v143
    %v147 = vmul.f32 %v135, %v144
    %148 = vst [vmem:[#allocation13] sm:$0xff] %v145
    %149 = vst [vmem:[#allocation13 + $0x8] sm:$0xff] %v146
    %150 = vst [vmem:[#allocation13 + $0x10] sm:$0xff] %v147
    %v151 = vmax.f32 %v115, 0.0
    %v152 = vmax.f32 %v116, 0.0
    %v153 = vmax.f32 %v117, 0.0
    %v154 = vmin.f32 %v151, 100.0
    %v155 = vmin.f32 %v152, 100.0
    %v156 = vmin.f32 %v153, 100.0
    %157 = vst [vmem:[#allocation10] sm:$0xff] %v154
    %158 = vst [vmem:[#allocation10 + $0x8] sm:$0xff] %v155
    %159 = vst [vmem:[#allocation10 + $0x10] sm:$0xff] %v156
    %v160 = vmul.f32 %v154, 1.442695
    %v161 = vpow.pop %v160
    %v162 = vmul.f32 %v155, 1.442695
    %v163 = vpow.pop %v162
    %v164 = vmul.f32 %v156, 1.442695
    %v165 = vpow.pop %v164
    %v166 = vmul.f32 %v85, %v85
    %v167 = vmul.f32 %v86, %v86
    %v168 = vmul.f32 %v87, %v87
    %v169 = vmul.f32 %v161, %v166
    %v170 = vmul.f32 %v163, %v167
    %v171 = vmul.f32 %v165, %v168
    %v172 = vadd.f32 %v169, %v170
    %v173 = vadd.f32 %v172, %v171
    %174 = vst [vmem:[#allocation14] sm:$0xff] %v173
    // Predicated region
    $region34: #{tpu_custom_call.1} parent=1 // pred_check
      _
    $region35: #{tpu_custom_call.1} parent=1 // pred_check_branch
      %176 = sbr.rel (0) target = $region37
    $region36: #{tpu_custom_call.1} parent=1 // pred_region
      %s178 = ssub.s32 384, 384
      %179 = vsyncadd [#allocation4], %s178
      %s180 = sshll.u32 [#allocation10], 4
      %s181 = int_to_ptr.vmem [resolvable:$true] %s180
      %186 = dma.vmem_to_hbm [thread:$0]  %s181, 384, %s4, [#allocation4], 128, 128, 8
    $region37: #{tpu_custom_call.1} parent=1 // pred_fallthru
      _
    // Predicated region
    $region38: #{tpu_custom_call.1} parent=1 // pred_check
      _
    $region39: #{tpu_custom_call.1} parent=1 // pred_check_branch
      %188 = sbr.rel (0) target = $region41
    $region40: #{tpu_custom_call.1} parent=1 // pred_region
      %s190 = ssub.s32 384, 384
      %191 = vsyncadd [#allocation12], %s190
      %s192 = sshll.u32 [#allocation11], 4
      %s193 = int_to_ptr.vmem [resolvable:$true] %s192
      %198 = dma.vmem_to_hbm [thread:$0]  %s193, 384, %s5, [#allocation12], 128, 128, 8
    $region41: #{tpu_custom_call.1} parent=1 // pred_fallthru
      _
    // Predicated region
    $region42: #{tpu_custom_call.1} parent=1 // pred_check
      _
    $region43: #{tpu_custom_call.1} parent=1 // pred_check_branch
      %200 = sbr.rel (0) target = $region45
    $region44: #{tpu_custom_call.1} parent=1 // pred_region
      %s202 = ssub.s32 384, 384
      %203 = vsyncadd [#allocation12], %s202
      %s204 = sshll.u32 [#allocation13], 4
      %s205 = int_to_ptr.vmem [resolvable:$true] %s204
      %210 = dma.vmem_to_hbm [thread:$0]  %s205, 384, %s6, [#allocation12], 128, 128, 8
    $region45: #{tpu_custom_call.1} parent=1 // pred_fallthru
      _
    // Predicated region
    $region46: #{tpu_custom_call.1} parent=1 // pred_check
      _
    $region47: #{tpu_custom_call.1} parent=1 // pred_check_branch
      %212 = sbr.rel (0) target = $region49
    $region48: #{tpu_custom_call.1} parent=1 // pred_region
      %s214 = ssub.s32 128, 128
      %215 = vsyncadd [#allocation15], %s214
      %s217 = sshll.u32 [#allocation14], 4
      %s218 = int_to_ptr.vmem [resolvable:$true] %s217
      %220 = dma.vmem_to_hbm [thread:$0]  %s218, 128, %s7, [#allocation15]
    $region49: #{tpu_custom_call.1} parent=1 // pred_fallthru
      _
    // Predicated region
    $region50: #{tpu_custom_call.1} parent=1 // pred_check
      _
    $region51: #{tpu_custom_call.1} parent=1 // pred_check_branch
      %222 = sbr.rel (0) target = $region53
    $region52: #{tpu_custom_call.1} parent=1 // pred_region
      %223 = dma.done [#allocation4], 384
    $region53: #{tpu_custom_call.1} parent=1 // pred_fallthru
      _
    // Predicated region
    $region54: #{tpu_custom_call.1} parent=1 // pred_check
      _
    $region55: #{tpu_custom_call.1} parent=1 // pred_check_branch
      %225 = sbr.rel (0) target = $region57
    $region56: #{tpu_custom_call.1} parent=1 // pred_region
      %226 = dma.done [#allocation12], 384
    $region57: #{tpu_custom_call.1} parent=1 // pred_fallthru
      _
    // Predicated region
    $region58: #{tpu_custom_call.1} parent=1 // pred_check
      _
    $region59: #{tpu_custom_call.1} parent=1 // pred_check_branch
      %228 = sbr.rel (0) target = $region61
    $region60: #{tpu_custom_call.1} parent=1 // pred_region
      %229 = dma.done [#allocation12], 384
    $region61: #{tpu_custom_call.1} parent=1 // pred_fallthru
      _
    // Predicated region
    $region62: #{tpu_custom_call.1} parent=1 // pred_check
      _
    $region63: #{tpu_custom_call.1} parent=1 // pred_check_branch
      %231 = sbr.rel (0) target = $region65
    $region64: #{tpu_custom_call.1} parent=1 // pred_region
      %232 = dma.done [#allocation15], 128
    $region65: #{tpu_custom_call.1} parent=1 // pred_fallthru
      _
    %233 = vsyncpa [#allocation3], 1
    %234 = vsyncpa [#allocation6], 1
    %235 = vsyncpa [#allocation9], 1
    %236 = vsyncpa [#allocation4], 1
    %237 = vsyncpa [#allocation12], 1
    %238 = vsyncpa [#allocation15], 1

</llo_original>
